<compile_context>
chip_gen: v7x
topology: tpu7x:2x2x1
jax: 0.10.0
libtpu: 0.0.40
codegen_flags: <defaults>
</compile_context>

<pallas_src>
import jax
import jax.numpy as jnp
from jax import lax
from jax.experimental import pallas as pl
from jax.experimental.pallas import tpu as pltpu


def _dot_xt_wt(x_blk, w_blk):
    # x_blk: (tm, tk), w_blk: (tn, tk)  ->  (tm, tn); f32 accumulation on MXU.
    return lax.dot_general(
        x_blk, w_blk,
        dimension_numbers=(((1,), (1,)), ((), ())),
        preferred_element_type=jnp.float32,
    )


def _linear_kernel_f32(x_ref, w_ref, b_ref, o_ref):
    """float32 output: accumulate directly into the K-resident output tile."""
    k = pl.program_id(2)

    @pl.when(k == 0)
    def _():
        # Bias folded into the init step (off the epilogue / store path).
        o_ref[...] = jnp.broadcast_to(b_ref[...], o_ref.shape)

    o_ref[...] += _dot_xt_wt(x_ref[...], w_ref[...])


def _linear_kernel_acc(x_ref, w_ref, b_ref, o_ref, acc_ref):
    """Low-precision output: f32 VMEM accumulator, cast once on the last K step."""
    k = pl.program_id(2)

    @pl.when(k == 0)
    def _():
        acc_ref[...] = jnp.broadcast_to(
            b_ref[...].astype(jnp.float32), acc_ref.shape)

    acc_ref[...] += _dot_xt_wt(x_ref[...], w_ref[...])

    @pl.when(k == pl.num_programs(2) - 1)
    def _():
        o_ref[...] = acc_ref[...].astype(o_ref.dtype)


def _round_up(x, m):
    return ((x + m - 1) // m) * m


def _pick_tile(dim, candidates):
    for c in candidates:
        if dim % c == 0:
            return c
    return dim  # fall back to the full dimension (always a legal block)


def linear_pallas(x_flat, weight, bias):
    """y = x_flat @ weight.T + bias.

    x_flat: (B, F); weight: (Hid, F) [PyTorch Linear layout]; bias: (Hid,).
    """
    B, F = x_flat.shape
    Hid = weight.shape[0]
    out_dtype = x_flat.dtype

    weight = weight.astype(out_dtype)

    # ---- Lane-dense output: pad Hid up to a multiple of 128. --------------
    # TODO(synk): in a real model, pad/pack the parameters once at load time
    # instead of per forward call.
    Hid_p = _round_up(max(Hid, 128), 128)
    if Hid_p != Hid:
        weight = jnp.pad(weight, ((0, Hid_p - Hid), (0, 0)))
        bias = jnp.pad(bias, (0, Hid_p - Hid))
    b2d = bias.reshape(1, Hid_p).astype(jnp.float32)

    # ---- K tiling: single step for small F, else 512/256/128 tiles. -------
    if F <= 2048:
        tk, F_p = F, F                       # one K step: no reduction loop
    else:
        tk = _pick_tile(F, (512, 256, 128))
        if tk == F:                          # ragged F: pad to a 256 multiple
            tk = 256
        F_p = _round_up(F, tk)
        if F_p != F:
            x_flat = jnp.pad(x_flat, ((0, 0), (0, F_p - F)))
            weight = jnp.pad(weight, ((0, 0), (0, F_p - F)))

    # ---- M / N tiling. -----------------------------------------------------
    tm = B if B <= 512 else _pick_tile(B, (512, 256, 128, 64, 32, 16, 8))
    tn = Hid_p if Hid_p <= 1024 else _pick_tile(Hid_p, (1024, 512, 256, 128))

    grid = (B // tm, Hid_p // tn, F_p // tk)

    if out_dtype == jnp.float32:
        kernel = _linear_kernel_f32
        scratch_shapes = []
    else:
        kernel = _linear_kernel_acc
        scratch_shapes = [pltpu.VMEM((tm, tn), jnp.float32)]

    y_p = pl.pallas_call(
        kernel,
        out_shape=jax.ShapeDtypeStruct((B, Hid_p), out_dtype),
        grid_spec=pltpu.PrefetchScalarGridSpec(
            num_scalar_prefetch=0,
            grid=grid,
            in_specs=[
                pl.BlockSpec((tm, tk), lambda i, j, k: (i, k)),   # x tile
                pl.BlockSpec((tn, tk), lambda i, j, k: (j, k)),   # W tile (Hid, F)
                pl.BlockSpec((1, tn), lambda i, j, k: (0, j)),    # bias tile
            ],
            out_specs=pl.BlockSpec((tm, tn), lambda i, j, k: (i, j)),
            scratch_shapes=scratch_shapes,
        ),
        compiler_params=pltpu.CompilerParams(
            dimension_semantics=("parallel", "parallel", "arbitrary"),
            # Explicit scoped-VMEM budget; fits within v7x's 64 MiB physical.
            vmem_limit_bytes=48 * 1024 * 1024,
        ),
    )(x_flat, weight, b2d)

    return y_p[:, :Hid] if Hid_p != Hid else y_p


def my_linear_forward(x, weight, bias):
    """Reproduces MyLinear.forward: flatten the last 3 dims, then Linear."""
    lead = x.shape[:-3]
    feature_dim = x.shape[-3] * x.shape[-2] * x.shape[-1]
    x_flat = x.reshape((-1, feature_dim))      # collapse leading dims for the kernel
    y = linear_pallas(x_flat, weight, bias)
    return y.reshape(lead + (weight.shape[0],))


if __name__ == "__main__":
    # Small shapes consistent with the module: x has >= 3 trailing dims (C, H, W).
    B, C, H, W = 2, 4, 16, 16                  # feature_dim = 1024
    feature_dim = C * H * W
    hid_dim = 64

    key = jax.random.PRNGKey(0)
    kx, kw, kb = jax.random.split(key, 3)

    x = jax.random.normal(kx, (B, C, H, W), dtype=jnp.float32)
    # Deterministic synthetic parameters (PyTorch Linear shapes: (hid, feat), (hid,)).
    bound = 1.0 / (feature_dim ** 0.5)
    weight = jax.random.uniform(kw, (hid_dim, feature_dim), jnp.float32, -bound, bound)
    bias = jax.random.uniform(kb, (hid_dim,), jnp.float32, -bound, bound)

    y = my_linear_forward(x, weight, bias)
    jax.block_until_ready(y)

    # Correctness check vs. plain JAX reference of the same semantics.
    y_ref = x.reshape(B, -1) @ weight.T + bias
    assert y.shape == (B, hid_dim)
    assert jnp.allclose(y, y_ref, atol=1e-4, rtol=1e-4)

    print("KERNEL_OK")
</pallas_src>

<mosaic_0001>
module attributes {stable_mosaic.version = 11 : i64} {
  func.func @_linear_kernel_f32(%arg0: i32, %arg1: i32, %arg2: i32, %arg3: memref<2x1024xf32, #tpu.memory_space<vmem>>, %arg4: memref<128x1024xf32, #tpu.memory_space<vmem>>, %arg5: memref<1x128xf32, #tpu.memory_space<vmem>>, %arg6: memref<2x128xf32, #tpu.memory_space<vmem>>) attributes {dimension_semantics = [#tpu.dimension_semantics<parallel>, #tpu.dimension_semantics<parallel>, #tpu.dimension_semantics<arbitrary>], iteration_bounds = array<i64: 1, 1, 1>, scalar_prefetch = 0 : i64, scratch_operands = 0 : i64, tpu.core_type = #tpu.core_type<tc>, window_params = [{transform_indices = @transform_0, window_bounds = array<i64: 2, 1024>}, {transform_indices = @transform_1, window_bounds = array<i64: 128, 1024>}, {transform_indices = @transform_2, window_bounds = array<i64: 1, 128>}, {transform_indices = @transform_3, window_bounds = array<i64: 2, 128>}]} {
    %c0_i32 = arith.constant 0 : i32
    %0 = arith.cmpi eq, %arg2, %c0_i32 : i32
    %1 = arith.extui %0 : i1 to i32
    %c0_i32_0 = arith.constant 0 : i32
    %2 = arith.cmpi ne, %1, %c0_i32_0 : i32
    scf.if %2 {
      %c0_8 = arith.constant 0 : index
      %c0_9 = arith.constant 0 : index
      %9 = vector.load %arg5[%c0_8, %c0_9] : memref<1x128xf32, #tpu.memory_space<vmem>>, vector<1x128xf32>
      %10 = vector.shape_cast %9 : vector<1x128xf32> to vector<1x128xf32>
      %11 = vector.broadcast %10 : vector<1x128xf32> to vector<2x128xf32>
      %c0_10 = arith.constant 0 : index
      %c0_11 = arith.constant 0 : index
      %12 = vector.load %arg6[%c0_10, %c0_11] : memref<2x128xf32, #tpu.memory_space<vmem>>, vector<2x128xf32>
      tpu.vector_store %arg6[%c0_10, %c0_11], %11 {strides = array<i32>} : memref<2x128xf32, #tpu.memory_space<vmem>>, vector<2x128xf32>,
    } else {
    }
    %c0 = arith.constant 0 : index
    %c0_1 = arith.constant 0 : index
    %3 = vector.load %arg6[%c0, %c0_1] : memref<2x128xf32, #tpu.memory_space<vmem>>, vector<2x128xf32>
    %c0_2 = arith.constant 0 : index
    %c0_3 = arith.constant 0 : index
    %4 = vector.load %arg3[%c0_2, %c0_3] : memref<2x1024xf32, #tpu.memory_space<vmem>>, vector<2x1024xf32>
    %c0_4 = arith.constant 0 : index
    %c0_5 = arith.constant 0 : index
    %5 = vector.load %arg4[%c0_4, %c0_5] : memref<128x1024xf32, #tpu.memory_space<vmem>>, vector<128x1024xf32>
    %cst = arith.constant dense<0.000000e+00> : vector<2x128xf32>
    %6 = tpu.matmul %4, %5, %cst {dimension_numbers = #tpu.dot_dimension_numbers<[1], [1], [0], [0], [0, 0, 1, 0], [], []>} : vector<2x1024xf32>, vector<128x1024xf32>, vector<2x128xf32> -> vector<2x128xf32>
    %7 = arith.addf %3, %6 : vector<2x128xf32>
    %c0_6 = arith.constant 0 : index
    %c0_7 = arith.constant 0 : index
    %8 = vector.load %arg6[%c0_6, %c0_7] : memref<2x128xf32, #tpu.memory_space<vmem>>, vector<2x128xf32>
    tpu.vector_store %arg6[%c0_6, %c0_7], %7 {strides = array<i32>} : memref<2x128xf32, #tpu.memory_space<vmem>>, vector<2x128xf32>,
    return
  }
  func.func @transform_0(%arg0: i32, %arg1: i32, %arg2: i32) -> (i32, i32) {
    %c0_i32 = arith.constant 0 : i32
    return %arg0, %arg2 : i32, i32
  }
  func.func @transform_1(%arg0: i32, %arg1: i32, %arg2: i32) -> (i32, i32) {
    %c0_i32 = arith.constant 0 : i32
    return %arg1, %arg2 : i32, i32
  }
  func.func @transform_2(%arg0: i32, %arg1: i32, %arg2: i32) -> (i32, i32) {
    %c0_i32 = arith.constant 0 : i32
    %c0_i32_0 = arith.constant 0 : i32
    return %c0_i32, %arg1 : i32, i32
  }
  func.func @transform_3(%arg0: i32, %arg1: i32, %arg2: i32) -> (i32, i32) {
    %c0_i32 = arith.constant 0 : i32
    return %arg0, %arg1 : i32, i32
  }
}

</mosaic_0001>

<llo_original>
// kernel: tpu_custom_call.1
$region0: #{tpu_custom_call.1}
  #allocation0 [shape = 'u32[]', space=smem, size = 0x4, offset = 0x4, fixed_abs, tag = 'smem constant byte address 0x4 - core index']
  #allocation1 [shape = 'u32[144,128]{1,0:T(1,128)}', space=vmem, size = 0x12000, scoped, tag = 'internal scratch']
  %s0 = inlined_call_operand.hbm [shape: f32[2,1024], index: 0, kind: input, shape index: {}]
  %s1 = inlined_call_operand.hbm [shape: f32[128,1024], index: 1, kind: input, shape index: {}]
  %s2 = inlined_call_operand.vmem [shape: f32[1,128], index: 2, kind: input, shape index: {}]
  %s3 = inlined_call_operand.hbm [shape: f32[2,128], index: 3, kind: output, shape index: {}]
  %s4 = sld [smem:[#allocation0]]
  $region34: #{tpu_custom_call.1} parent=0
    _
  %s6 = ssub.s32 1, %s4
  %s7 = scalar_select 0, %s6, %s4
  $region1: #{tpu_custom_call.1} parent=0
    #allocation2 [shape = 'u8[8192]{0}', space=vmem, size = 0x2000, scoped, tag = 'input window, operand 0, single buffered']
    #allocation3 [shape = 's32[1]{0}', space=sflag, size = 0x4, scoped, tag = 'scoped memory for tpu_custom_call.1']
    #allocation4 [shape = 's32[1]{0}', space=sflag, size = 0x4, scoped, tag = 'scoped memory for tpu_custom_call.1']
    #allocation5 [shape = 'u8[524288]{0}', space=vmem, size = 0x80000, scoped, tag = 'input window, operand 1, single buffered']
    #allocation6 [shape = 's32[1]{0}', space=sflag, size = 0x4, scoped, tag = 'scoped memory for tpu_custom_call.1']
    #allocation7 [shape = 'u8[1024]{0}', space=vmem, size = 0x400, scoped, tag = 'output window, operand 0, single buffered']
    %8 = vsyncpa [#allocation3], 0
    %9 = vsyncpa [#allocation6], 0
    %10 = vsyncpa [#allocation4], 0
    // Predicated region
    $region2: #{tpu_custom_call.1} parent=1 // pred_check
      _
    $region3: #{tpu_custom_call.1} parent=1 // pred_check_branch
      %12 = sbr.rel (0) target = $region5
    $region4: #{tpu_custom_call.1} parent=1 // pred_region
      %s14 = ssub.s32 256, 256
      %15 = vsyncadd [#allocation3], %s14
      %s17 = sshll.u32 [#allocation2], 4
      %s18 = int_to_ptr.vmem [resolvable:$true] %s17
      %20 = dma.hbm_to_vmem [thread:$0]  %s0, 256, %s18, [#allocation3]
    $region5: #{tpu_custom_call.1} parent=1 // pred_fallthru
      _
    // Predicated region
    $region6: #{tpu_custom_call.1} parent=1 // pred_check
      _
    $region7: #{tpu_custom_call.1} parent=1 // pred_check_branch
      %22 = sbr.rel (0) target = $region9
    $region8: #{tpu_custom_call.1} parent=1 // pred_region
      %s24 = ssub.s32 16384, 16384
      %25 = vsyncadd [#allocation6], %s24
      %s26 = sshll.u32 [#allocation5], 4
      %s27 = int_to_ptr.vmem [resolvable:$true] %s26
      %32 = dma.hbm_to_vmem [thread:$0]  %s1, 16384, %s27, [#allocation6], 1024, 1024, 64
    $region9: #{tpu_custom_call.1} parent=1 // pred_fallthru
      _
    // Predicated region
    $region10: #{tpu_custom_call.1} parent=1 // pred_check
      _
    $region11: #{tpu_custom_call.1} parent=1 // pred_check_branch
      %34 = sbr.rel (0) target = $region13
    $region12: #{tpu_custom_call.1} parent=1 // pred_region
      _
    $region13: #{tpu_custom_call.1} parent=1 // pred_fallthru
      _
    // Predicated region
    $region14: #{tpu_custom_call.1} parent=1 // pred_check
      _
    $region15: #{tpu_custom_call.1} parent=1 // pred_check_branch
      %36 = sbr.rel (0) target = $region17
    $region16: #{tpu_custom_call.1} parent=1 // pred_region
      %37 = dma.done [#allocation3], 256
    $region17: #{tpu_custom_call.1} parent=1 // pred_fallthru
      _
    // Predicated region
    $region18: #{tpu_custom_call.1} parent=1 // pred_check
      _
    $region19: #{tpu_custom_call.1} parent=1 // pred_check_branch
      %39 = sbr.rel (0) target = $region21
    $region20: #{tpu_custom_call.1} parent=1 // pred_region
      %40 = dma.done [#allocation6], 16384
    $region21: #{tpu_custom_call.1} parent=1 // pred_fallthru
      _
    %p41 = scmp.eq.s32.totalorder 0, 0
    // Predicated region
    $region22: #{tpu_custom_call.1} parent=1 // pred_check
      %p42 = pneg %p41
    $region23: #{tpu_custom_call.1} parent=1 // pred_check_branch
      %44 = sbr.rel (%p42) target = $region25
    $region24: #{tpu_custom_call.1} parent=1 // pred_region
      %v45 = vld [vmem:[%s2] sm:$0x1]
      %v47 = vlaneseq
      %v48 = vshrl.u32 %v47, 7
      %v49 = vsub.s32 0, %v48
      %v50 = vrot.slane %v45, %v49
      %52 = vst [vmem:[#allocation7] sm:$0x3] %v50
    $region25: #{tpu_custom_call.1} parent=1 // pred_fallthru
      _
    %v53 = vld [vmem:[#allocation7] sm:$0x3]
    %v54 = vld [vmem:[#allocation2] sm:$0xff]
    %v55 = vld [vmem:[#allocation2 + $0x8] sm:$0xff]
    %v56 = vld [vmem:[#allocation5] sm:$0xff]
    %v57 = vld [vmem:[#allocation5 + $0x8] sm:$0xff]
    %v58 = vld [vmem:[#allocation5 + $0x10] sm:$0xff]
    %v59 = vld [vmem:[#allocation5 + $0x18] sm:$0xff]
    %v60 = vld [vmem:[#allocation5 + $0x20] sm:$0xff]
    %v61 = vld [vmem:[#allocation5 + $0x28] sm:$0xff]
    %v62 = vld [vmem:[#allocation5 + $0x30] sm:$0xff]
    %v63 = vld [vmem:[#allocation5 + $0x38] sm:$0xff]
    %v64 = vld [vmem:[#allocation5 + $0x40] sm:$0xff]
    %v65 = vld [vmem:[#allocation5 + $0x48] sm:$0xff]
    %v66 = vld [vmem:[#allocation5 + $0x50] sm:$0xff]
    %v67 = vld [vmem:[#allocation5 + $0x58] sm:$0xff]
    %v68 = vld [vmem:[#allocation5 + $0x60] sm:$0xff]
    %v69 = vld [vmem:[#allocation5 + $0x68] sm:$0xff]
    %v70 = vld [vmem:[#allocation5 + $0x70] sm:$0xff]
    %v71 = vld [vmem:[#allocation5 + $0x78] sm:$0xff]
    %v72 = vld [vmem:[#allocation5 + $0x80] sm:$0xff]
    %v73 = vld [vmem:[#allocation5 + $0x88] sm:$0xff]
    %v74 = vld [vmem:[#allocation5 + $0x90] sm:$0xff]
    %v75 = vld [vmem:[#allocation5 + $0x98] sm:$0xff]
    %v76 = vld [vmem:[#allocation5 + $0xa0] sm:$0xff]
    %v77 = vld [vmem:[#allocation5 + $0xa8] sm:$0xff]
    %v78 = vld [vmem:[#allocation5 + $0xb0] sm:$0xff]
    %v79 = vld [vmem:[#allocation5 + $0xb8] sm:$0xff]
    %v80 = vld [vmem:[#allocation5 + $0xc0] sm:$0xff]
    %v81 = vld [vmem:[#allocation5 + $0xc8] sm:$0xff]
    %v82 = vld [vmem:[#allocation5 + $0xd0] sm:$0xff]
    %v83 = vld [vmem:[#allocation5 + $0xd8] sm:$0xff]
    %v84 = vld [vmem:[#allocation5 + $0xe0] sm:$0xff]
    %v85 = vld [vmem:[#allocation5 + $0xe8] sm:$0xff]
    %v86 = vld [vmem:[#allocation5 + $0xf0] sm:$0xff]
    %v87 = vld [vmem:[#allocation5 + $0xf8] sm:$0xff]
    %v88 = vld [vmem:[#allocation5 + $0x100] sm:$0xff]
    %v89 = vld [vmem:[#allocation5 + $0x108] sm:$0xff]
    %v90 = vld [vmem:[#allocation5 + $0x110] sm:$0xff]
    %v91 = vld [vmem:[#allocation5 + $0x118] sm:$0xff]
    %v92 = vld [vmem:[#allocation5 + $0x120] sm:$0xff]
    %v93 = vld [vmem:[#allocation5 + $0x128] sm:$0xff]
    %v94 = vld [vmem:[#allocation5 + $0x130] sm:$0xff]
    %v95 = vld [vmem:[#allocation5 + $0x138] sm:$0xff]
    %v96 = vld [vmem:[#allocation5 + $0x140] sm:$0xff]
    %v97 = vld [vmem:[#allocation5 + $0x148] sm:$0xff]
    %v98 = vld [vmem:[#allocation5 + $0x150] sm:$0xff]
    %v99 = vld [vmem:[#allocation5 + $0x158] sm:$0xff]
    %v100 = vld [vmem:[#allocation5 + $0x160] sm:$0xff]
    %v101 = vld [vmem:[#allocation5 + $0x168] sm:$0xff]
    %v102 = vld [vmem:[#allocation5 + $0x170] sm:$0xff]
    %v103 = vld [vmem:[#allocation5 + $0x178] sm:$0xff]
    %v104 = vld [vmem:[#allocation5 + $0x180] sm:$0xff]
    %v105 = vld [vmem:[#allocation5 + $0x188] sm:$0xff]
    %v106 = vld [vmem:[#allocation5 + $0x190] sm:$0xff]
    %v107 = vld [vmem:[#allocation5 + $0x198] sm:$0xff]
    %v108 = vld [vmem:[#allocation5 + $0x1a0] sm:$0xff]
    %v109 = vld [vmem:[#allocation5 + $0x1a8] sm:$0xff]
    %v110 = vld [vmem:[#allocation5 + $0x1b0] sm:$0xff]
    %v111 = vld [vmem:[#allocation5 + $0x1b8] sm:$0xff]
    %v112 = vld [vmem:[#allocation5 + $0x1c0] sm:$0xff]
    %v113 = vld [vmem:[#allocation5 + $0x1c8] sm:$0xff]
    %v114 = vld [vmem:[#allocation5 + $0x1d0] sm:$0xff]
    %v115 = vld [vmem:[#allocation5 + $0x1d8] sm:$0xff]
    %v116 = vld [vmem:[#allocation5 + $0x1e0] sm:$0xff]
    %v117 = vld [vmem:[#allocation5 + $0x1e8] sm:$0xff]
    %v118 = vld [vmem:[#allocation5 + $0x1f0] sm:$0xff]
    %v119 = vld [vmem:[#allocation5 + $0x1f8] sm:$0xff]
    %v120 = vld [vmem:[#allocation5 + $0x200] sm:$0xff]
    %v121 = vld [vmem:[#allocation5 + $0x208] sm:$0xff]
    %v122 = vld [vmem:[#allocation5 + $0x210] sm:$0xff]
    %v123 = vld [vmem:[#allocation5 + $0x218] sm:$0xff]
    %v124 = vld [vmem:[#allocation5 + $0x220] sm:$0xff]
    %v125 = vld [vmem:[#allocation5 + $0x228] sm:$0xff]
    %v126 = vld [vmem:[#allocation5 + $0x230] sm:$0xff]
    %v127 = vld [vmem:[#allocation5 + $0x238] sm:$0xff]
    %v128 = vld [vmem:[#allocation5 + $0x240] sm:$0xff]
    %v129 = vld [vmem:[#allocation5 + $0x248] sm:$0xff]
    %v130 = vld [vmem:[#allocation5 + $0x250] sm:$0xff]
    %v131 = vld [vmem:[#allocation5 + $0x258] sm:$0xff]
    %v132 = vld [vmem:[#allocation5 + $0x260] sm:$0xff]
    %v133 = vld [vmem:[#allocation5 + $0x268] sm:$0xff]
    %v134 = vld [vmem:[#allocation5 + $0x270] sm:$0xff]
    %v135 = vld [vmem:[#allocation5 + $0x278] sm:$0xff]
    %v136 = vld [vmem:[#allocation5 + $0x280] sm:$0xff]
    %v137 = vld [vmem:[#allocation5 + $0x288] sm:$0xff]
    %v138 = vld [vmem:[#allocation5 + $0x290] sm:$0xff]
    %v139 = vld [vmem:[#allocation5 + $0x298] sm:$0xff]
    %v140 = vld [vmem:[#allocation5 + $0x2a0] sm:$0xff]
    %v141 = vld [vmem:[#allocation5 + $0x2a8] sm:$0xff]
    %v142 = vld [vmem:[#allocation5 + $0x2b0] sm:$0xff]
    %v143 = vld [vmem:[#allocation5 + $0x2b8] sm:$0xff]
    %v144 = vld [vmem:[#allocation5 + $0x2c0] sm:$0xff]
    %v145 = vld [vmem:[#allocation5 + $0x2c8] sm:$0xff]
    %v146 = vld [vmem:[#allocation5 + $0x2d0] sm:$0xff]
    %v147 = vld [vmem:[#allocation5 + $0x2d8] sm:$0xff]
    %v148 = vld [vmem:[#allocation5 + $0x2e0] sm:$0xff]
    %v149 = vld [vmem:[#allocation5 + $0x2e8] sm:$0xff]
    %v150 = vld [vmem:[#allocation5 + $0x2f0] sm:$0xff]
    %v151 = vld [vmem:[#allocation5 + $0x2f8] sm:$0xff]
    %v152 = vld [vmem:[#allocation5 + $0x300] sm:$0xff]
    %v153 = vld [vmem:[#allocation5 + $0x308] sm:$0xff]
    %v154 = vld [vmem:[#allocation5 + $0x310] sm:$0xff]
    %v155 = vld [vmem:[#allocation5 + $0x318] sm:$0xff]
    %v156 = vld [vmem:[#allocation5 + $0x320] sm:$0xff]
    %v157 = vld [vmem:[#allocation5 + $0x328] sm:$0xff]
    %v158 = vld [vmem:[#allocation5 + $0x330] sm:$0xff]
    %v159 = vld [vmem:[#allocation5 + $0x338] sm:$0xff]
    %v160 = vld [vmem:[#allocation5 + $0x340] sm:$0xff]
    %v161 = vld [vmem:[#allocation5 + $0x348] sm:$0xff]
    %v162 = vld [vmem:[#allocation5 + $0x350] sm:$0xff]
    %v163 = vld [vmem:[#allocation5 + $0x358] sm:$0xff]
    %v164 = vld [vmem:[#allocation5 + $0x360] sm:$0xff]
    %v165 = vld [vmem:[#allocation5 + $0x368] sm:$0xff]
    %v166 = vld [vmem:[#allocation5 + $0x370] sm:$0xff]
    %v167 = vld [vmem:[#allocation5 + $0x378] sm:$0xff]
    %v168 = vld [vmem:[#allocation5 + $0x380] sm:$0xff]
    %v169 = vld [vmem:[#allocation5 + $0x388] sm:$0xff]
    %v170 = vld [vmem:[#allocation5 + $0x390] sm:$0xff]
    %v171 = vld [vmem:[#allocation5 + $0x398] sm:$0xff]
    %v172 = vld [vmem:[#allocation5 + $0x3a0] sm:$0xff]
    %v173 = vld [vmem:[#allocation5 + $0x3a8] sm:$0xff]
    %v174 = vld [vmem:[#allocation5 + $0x3b0] sm:$0xff]
    %v175 = vld [vmem:[#allocation5 + $0x3b8] sm:$0xff]
    %v176 = vld [vmem:[#allocation5 + $0x3c0] sm:$0xff]
    %v177 = vld [vmem:[#allocation5 + $0x3c8] sm:$0xff]
    %v178 = vld [vmem:[#allocation5 + $0x3d0] sm:$0xff]
    %v179 = vld [vmem:[#allocation5 + $0x3d8] sm:$0xff]
    %v180 = vld [vmem:[#allocation5 + $0x3e0] sm:$0xff]
    %v181 = vld [vmem:[#allocation5 + $0x3e8] sm:$0xff]
    %v182 = vld [vmem:[#allocation5 + $0x3f0] sm:$0xff]
    %v183 = vld [vmem:[#allocation5 + $0x3f8] sm:$0xff]
    %v186 = vcombine.high %v54, %v54
    %v188 = vunpack.c.l.s4 1983009808
    %v189 = vunpack.c.0.s8 %v188
    %v190 = vlaneseq
    %v191 = vshrl.u32 %v190, 7
    %v192 = vsub.s32 %v189, %v191
    %v193 = vrot.slane %v54, %v192
    %v195 = vunpack.c.l.s4 1983009808
    %v196 = vunpack.c.0.s8 %v195
    %v197 = vlaneseq
    %v198 = vshrl.u32 %v197, 7
    %v199 = vsub.s32 %v196, %v198
    %v200 = vrot.slane %v186, %v199
    %v201 = vcombine.high %v193, %v193
    %v202 = vcombine.high %v200, %v200
    %v203 = vcombine.high %v55, %v55
    %v205 = vunpack.c.l.s4 1983009808
    %v206 = vunpack.c.0.s8 %v205
    %v207 = vlaneseq
    %v208 = vshrl.u32 %v207, 7
    %v209 = vsub.s32 %v206, %v208
    %v210 = vrot.slane %v55, %v209
    %v212 = vunpack.c.l.s4 1983009808
    %v213 = vunpack.c.0.s8 %v212
    %v214 = vlaneseq
    %v215 = vshrl.u32 %v214, 7
    %v216 = vsub.s32 %v213, %v215
    %v217 = vrot.slane %v203, %v216
    %v218 = vcombine.high %v210, %v210
    %v219 = vcombine.high %v217, %v217
    %228 = vmatprep.subr.mxu0 %v57
    %229 = vmatpush1.xpose.msra.mxu0 %v56
    %230 = vmatprep.subr.mxu0 %v65
    %231 = vmatpush1.xpose.msra.mxu0 %v64
    %232 = vmatprep.subr.mxu0 %v73
    %233 = vmatpush1.xpose.msra.mxu0 %v72
    %234 = vmatprep.subr.mxu0 %v81
    %235 = vmatpush1.xpose.msra.mxu0 %v80
    %236 = vmatprep.subr.mxu0 %v89
    %237 = vmatpush1.xpose.msra.mxu0 %v88
    %238 = vmatprep.subr.mxu0 %v97
    %239 = vmatpush1.xpose.msra.mxu0 %v96
    %240 = vmatprep.subr.mxu0 %v105
    %241 = vmatpush1.xpose.msra.mxu0 %v104
    %242 = vmatprep.subr.mxu0 %v113
    %243 = vmatpush1.xpose.msra.mxu0 %v112
    %244 = vmatprep.subr.mxu0 %v121
    %245 = vmatpush1.xpose.msra.mxu0 %v120
    %246 = vmatprep.subr.mxu0 %v129
    %247 = vmatpush1.xpose.msra.mxu0 %v128
    %248 = vmatprep.subr.mxu0 %v137
    %249 = vmatpush1.xpose.msra.mxu0 %v136
    %250 = vmatprep.subr.mxu0 %v145
    %251 = vmatpush1.xpose.msra.mxu0 %v144
    %252 = vmatprep.subr.mxu0 %v153
    %253 = vmatpush1.xpose.msra.mxu0 %v152
    %254 = vmatprep.subr.mxu0 %v161
    %255 = vmatpush1.xpose.msra.mxu0 %v160
    %256 = vmatprep.subr.mxu0 %v169
    %257 = vmatpush1.xpose.msra.mxu0 %v168
    %258 = vmatprep.subr.mxu0 %v177
    %259 = vmatpush1.xpose.msra.mxu0 %v176
    %260 = vmatprep.subr.mxu0 0.0
    %261 = vmatpush1.xpose.msra.mxu0 0.0
    %262 = vmatprep.subr.mxu0 0.0
    %263 = vmatpush1.xpose.msra.mxu0 0.0
    %264 = vmatprep.subr.mxu0 0.0
    %265 = vmatpush1.xpose.msra.mxu0 0.0
    %266 = vmatprep.subr.mxu0 0.0
    %267 = vmatpush1.xpose.msra.mxu0 0.0
    %268 = vmatprep.subr.mxu0 0.0
    %269 = vmatpush1.xpose.msra.mxu0 0.0
    %270 = vmatprep.subr.mxu0 0.0
    %271 = vmatpush1.xpose.msra.mxu0 0.0
    %272 = vmatprep.subr.mxu0 0.0
    %273 = vmatpush1.xpose.msra.mxu0 0.0
    %274 = vmatprep.subr.mxu0 0.0
    %275 = vmatpush1.xpose.msra.mxu0 0.0
    %276 = vmatprep.subr.mxu0 0.0
    %277 = vmatpush1.xpose.msra.mxu0 0.0
    %278 = vmatprep.subr.mxu0 0.0
    %279 = vmatpush1.xpose.msra.mxu0 0.0
    %280 = vmatprep.subr.mxu0 0.0
    %281 = vmatpush1.xpose.msra.mxu0 0.0
    %282 = vmatprep.subr.mxu0 0.0
    %283 = vmatpush1.xpose.msra.mxu0 0.0
    %284 = vmatprep.subr.mxu0 0.0
    %285 = vmatpush1.xpose.msra.mxu0 0.0
    %286 = vmatprep.subr.mxu0 0.0
    %287 = vmatpush1.xpose.msra.mxu0 0.0
    %288 = vmatprep.subr.mxu0 0.0
    %289 = vmatpush1.xpose.msra.mxu0 0.0
    %290 = vmatprep.subr.mxu0 0.0
    %291 = vmatpush1.xpose.msra.mxu0 0.0
    %292 = vmatprep.mubr.f32.mxu0 %v201
    %293 = vmatmul.mubr.f32.gmra.mrb[0].mxu0 %v193
    %v294 = vpop.f32.mrb[0].mxu0
    %v295 = vadd.f32 0.0, %v294
    %v296 = vpop.f32.mrb[0].mxu0
    %297 = vdwg.mxu0
    %298 = vmatprep.subr.mxu0 %v59
    %299 = vmatpush1.xpose.msra.mxu0 %v58
    %300 = vmatprep.subr.mxu0 %v67
    %301 = vmatpush1.xpose.msra.mxu0 %v66
    %302 = vmatprep.subr.mxu0 %v75
    %303 = vmatpush1.xpose.msra.mxu0 %v74
    %304 = vmatprep.subr.mxu0 %v83
    %305 = vmatpush1.xpose.msra.mxu0 %v82
    %306 = vmatprep.subr.mxu0 %v91
    %307 = vmatpush1.xpose.msra.mxu0 %v90
    %308 = vmatprep.subr.mxu0 %v99
    %309 = vmatpush1.xpose.msra.mxu0 %v98
    %310 = vmatprep.subr.mxu0 %v107
    %311 = vmatpush1.xpose.msra.mxu0 %v106
    %312 = vmatprep.subr.mxu0 %v115
    %313 = vmatpush1.xpose.msra.mxu0 %v114
    %314 = vmatprep.subr.mxu0 %v123
    %315 = vmatpush1.xpose.msra.mxu0 %v122
    %316 = vmatprep.subr.mxu0 %v131
    %317 = vmatpush1.xpose.msra.mxu0 %v130
    %318 = vmatprep.subr.mxu0 %v139
    %319 = vmatpush1.xpose.msra.mxu0 %v138
    %320 = vmatprep.subr.mxu0 %v147
    %321 = vmatpush1.xpose.msra.mxu0 %v146
    %322 = vmatprep.subr.mxu0 %v155
    %323 = vmatpush1.xpose.msra.mxu0 %v154
    %324 = vmatprep.subr.mxu0 %v163
    %325 = vmatpush1.xpose.msra.mxu0 %v162
    %326 = vmatprep.subr.mxu0 %v171
    %327 = vmatpush1.xpose.msra.mxu0 %v170
    %328 = vmatprep.subr.mxu0 %v179
    %329 = vmatpush1.xpose.msra.mxu0 %v178
    %330 = vmatprep.subr.mxu0 0.0
    %331 = vmatpush1.xpose.msra.mxu0 0.0
    %332 = vmatprep.subr.mxu0 0.0
    %333 = vmatpush1.xpose.msra.mxu0 0.0
    %334 = vmatprep.subr.mxu0 0.0
    %335 = vmatpush1.xpose.msra.mxu0 0.0
    %336 = vmatprep.subr.mxu0 0.0
    %337 = vmatpush1.xpose.msra.mxu0 0.0
    %338 = vmatprep.subr.mxu0 0.0
    %339 = vmatpush1.xpose.msra.mxu0 0.0
    %340 = vmatprep.subr.mxu0 0.0
    %341 = vmatpush1.xpose.msra.mxu0 0.0
    %342 = vmatprep.subr.mxu0 0.0
    %343 = vmatpush1.xpose.msra.mxu0 0.0
    %344 = vmatprep.subr.mxu0 0.0
    %345 = vmatpush1.xpose.msra.mxu0 0.0
    %346 = vmatprep.subr.mxu0 0.0
    %347 = vmatpush1.xpose.msra.mxu0 0.0
    %348 = vmatprep.subr.mxu0 0.0
    %349 = vmatpush1.xpose.msra.mxu0 0.0
    %350 = vmatprep.subr.mxu0 0.0
    %351 = vmatpush1.xpose.msra.mxu0 0.0
    %352 = vmatprep.subr.mxu0 0.0
    %353 = vmatpush1.xpose.msra.mxu0 0.0
    %354 = vmatprep.subr.mxu0 0.0
    %355 = vmatpush1.xpose.msra.mxu0 0.0
    %356 = vmatprep.subr.mxu0 0.0
    %357 = vmatpush1.xpose.msra.mxu0 0.0
    %358 = vmatprep.subr.mxu0 0.0
    %359 = vmatpush1.xpose.msra.mxu0 0.0
    %360 = vmatprep.subr.mxu0 0.0
    %361 = vmatpush1.xpose.msra.mxu0 0.0
    %362 = vmatprep.mubr.f32.mxu0 %v202
    %363 = vmatmul.mubr.f32.gmra.mrb[0].mxu0 %v200
    %v364 = vpop.f32.mrb[0].mxu0
    %v365 = vadd.f32 %v295, %v364
    %v366 = vpop.f32.mrb[0].mxu0
    %367 = vdwg.mxu0
    %368 = vmatprep.subr.mxu0 %v61
    %369 = vmatpush1.xpose.msra.mxu0 %v60
    %370 = vmatprep.subr.mxu0 %v69
    %371 = vmatpush1.xpose.msra.mxu0 %v68
    %372 = vmatprep.subr.mxu0 %v77
    %373 = vmatpush1.xpose.msra.mxu0 %v76
    %374 = vmatprep.subr.mxu0 %v85
    %375 = vmatpush1.xpose.msra.mxu0 %v84
    %376 = vmatprep.subr.mxu0 %v93
    %377 = vmatpush1.xpose.msra.mxu0 %v92
    %378 = vmatprep.subr.mxu0 %v101
    %379 = vmatpush1.xpose.msra.mxu0 %v100
    %380 = vmatprep.subr.mxu0 %v109
    %381 = vmatpush1.xpose.msra.mxu0 %v108
    %382 = vmatprep.subr.mxu0 %v117
    %383 = vmatpush1.xpose.msra.mxu0 %v116
    %384 = vmatprep.subr.mxu0 %v125
    %385 = vmatpush1.xpose.msra.mxu0 %v124
    %386 = vmatprep.subr.mxu0 %v133
    %387 = vmatpush1.xpose.msra.mxu0 %v132
    %388 = vmatprep.subr.mxu0 %v141
    %389 = vmatpush1.xpose.msra.mxu0 %v140
    %390 = vmatprep.subr.mxu0 %v149
    %391 = vmatpush1.xpose.msra.mxu0 %v148
    %392 = vmatprep.subr.mxu0 %v157
    %393 = vmatpush1.xpose.msra.mxu0 %v156
    %394 = vmatprep.subr.mxu0 %v165
    %395 = vmatpush1.xpose.msra.mxu0 %v164
    %396 = vmatprep.subr.mxu0 %v173
    %397 = vmatpush1.xpose.msra.mxu0 %v172
    %398 = vmatprep.subr.mxu0 %v181
    %399 = vmatpush1.xpose.msra.mxu0 %v180
    %400 = vmatprep.subr.mxu0 0.0
    %401 = vmatpush1.xpose.msra.mxu0 0.0
    %402 = vmatprep.subr.mxu0 0.0
    %403 = vmatpush1.xpose.msra.mxu0 0.0
    %404 = vmatprep.subr.mxu0 0.0
    %405 = vmatpush1.xpose.msra.mxu0 0.0
    %406 = vmatprep.subr.mxu0 0.0
    %407 = vmatpush1.xpose.msra.mxu0 0.0
    %408 = vmatprep.subr.mxu0 0.0
    %409 = vmatpush1.xpose.msra.mxu0 0.0
    %410 = vmatprep.subr.mxu0 0.0
    %411 = vmatpush1.xpose.msra.mxu0 0.0
    %412 = vmatprep.subr.mxu0 0.0
    %413 = vmatpush1.xpose.msra.mxu0 0.0
    %414 = vmatprep.subr.mxu0 0.0
    %415 = vmatpush1.xpose.msra.mxu0 0.0
    %416 = vmatprep.subr.mxu0 0.0
    %417 = vmatpush1.xpose.msra.mxu0 0.0
    %418 = vmatprep.subr.mxu0 0.0
    %419 = vmatpush1.xpose.msra.mxu0 0.0
    %420 = vmatprep.subr.mxu0 0.0
    %421 = vmatpush1.xpose.msra.mxu0 0.0
    %422 = vmatprep.subr.mxu0 0.0
    %423 = vmatpush1.xpose.msra.mxu0 0.0
    %424 = vmatprep.subr.mxu0 0.0
    %425 = vmatpush1.xpose.msra.mxu0 0.0
    %426 = vmatprep.subr.mxu0 0.0
    %427 = vmatpush1.xpose.msra.mxu0 0.0
    %428 = vmatprep.subr.mxu0 0.0
    %429 = vmatpush1.xpose.msra.mxu0 0.0
    %430 = vmatprep.subr.mxu0 0.0
    %431 = vmatpush1.xpose.msra.mxu0 0.0
    %432 = vmatprep.mubr.f32.mxu0 %v218
    %433 = vmatmul.mubr.f32.gmra.mrb[0].mxu0 %v210
    %v434 = vpop.f32.mrb[0].mxu0
    %v435 = vadd.f32 %v365, %v434
    %v436 = vpop.f32.mrb[0].mxu0
    %437 = vdwg.mxu0
    %438 = vmatprep.subr.mxu0 %v63
    %439 = vmatpush1.xpose.msra.mxu0 %v62
    %440 = vmatprep.subr.mxu0 %v71
    %441 = vmatpush1.xpose.msra.mxu0 %v70
    %442 = vmatprep.subr.mxu0 %v79
    %443 = vmatpush1.xpose.msra.mxu0 %v78
    %444 = vmatprep.subr.mxu0 %v87
    %445 = vmatpush1.xpose.msra.mxu0 %v86
    %446 = vmatprep.subr.mxu0 %v95
    %447 = vmatpush1.xpose.msra.mxu0 %v94
    %448 = vmatprep.subr.mxu0 %v103
    %449 = vmatpush1.xpose.msra.mxu0 %v102
    %450 = vmatprep.subr.mxu0 %v111
    %451 = vmatpush1.xpose.msra.mxu0 %v110
    %452 = vmatprep.subr.mxu0 %v119
    %453 = vmatpush1.xpose.msra.mxu0 %v118
    %454 = vmatprep.subr.mxu0 %v127
    %455 = vmatpush1.xpose.msra.mxu0 %v126
    %456 = vmatprep.subr.mxu0 %v135
    %457 = vmatpush1.xpose.msra.mxu0 %v134
    %458 = vmatprep.subr.mxu0 %v143
    %459 = vmatpush1.xpose.msra.mxu0 %v142
    %460 = vmatprep.subr.mxu0 %v151
    %461 = vmatpush1.xpose.msra.mxu0 %v150
    %462 = vmatprep.subr.mxu0 %v159
    %463 = vmatpush1.xpose.msra.mxu0 %v158
    %464 = vmatprep.subr.mxu0 %v167
    %465 = vmatpush1.xpose.msra.mxu0 %v166
    %466 = vmatprep.subr.mxu0 %v175
    %467 = vmatpush1.xpose.msra.mxu0 %v174
    %468 = vmatprep.subr.mxu0 %v183
    %469 = vmatpush1.xpose.msra.mxu0 %v182
    %470 = vmatprep.subr.mxu0 0.0
    %471 = vmatpush1.xpose.msra.mxu0 0.0
    %472 = vmatprep.subr.mxu0 0.0
    %473 = vmatpush1.xpose.msra.mxu0 0.0
    %474 = vmatprep.subr.mxu0 0.0
    %475 = vmatpush1.xpose.msra.mxu0 0.0
    %476 = vmatprep.subr.mxu0 0.0
    %477 = vmatpush1.xpose.msra.mxu0 0.0
    %478 = vmatprep.subr.mxu0 0.0
    %479 = vmatpush1.xpose.msra.mxu0 0.0
    %480 = vmatprep.subr.mxu0 0.0
    %481 = vmatpush1.xpose.msra.mxu0 0.0
    %482 = vmatprep.subr.mxu0 0.0
    %483 = vmatpush1.xpose.msra.mxu0 0.0
    %484 = vmatprep.subr.mxu0 0.0
    %485 = vmatpush1.xpose.msra.mxu0 0.0
    %486 = vmatprep.subr.mxu0 0.0
    %487 = vmatpush1.xpose.msra.mxu0 0.0
    %488 = vmatprep.subr.mxu0 0.0
    %489 = vmatpush1.xpose.msra.mxu0 0.0
    %490 = vmatprep.subr.mxu0 0.0
    %491 = vmatpush1.xpose.msra.mxu0 0.0
    %492 = vmatprep.subr.mxu0 0.0
    %493 = vmatpush1.xpose.msra.mxu0 0.0
    %494 = vmatprep.subr.mxu0 0.0
    %495 = vmatpush1.xpose.msra.mxu0 0.0
    %496 = vmatprep.subr.mxu0 0.0
    %497 = vmatpush1.xpose.msra.mxu0 0.0
    %498 = vmatprep.subr.mxu0 0.0
    %499 = vmatpush1.xpose.msra.mxu0 0.0
    %500 = vmatprep.subr.mxu0 0.0
    %501 = vmatpush1.xpose.msra.mxu0 0.0
    %502 = vmatprep.mubr.f32.mxu0 %v219
    %503 = vmatmul.mubr.f32.gmra.mrb[0].mxu0 %v217
    %v504 = vpop.f32.mrb[0].mxu0
    %v505 = vadd.f32 %v435, %v504
    %v506 = vpop.f32.mrb[0].mxu0
    %507 = vdwg.mxu0
    %v508 = vadd.f32 %v53, %v505
    %509 = vst [vmem:[#allocation7] sm:$0x3] %v508
    // Predicated region
    $region26: #{tpu_custom_call.1} parent=1 // pred_check
      _
    $region27: #{tpu_custom_call.1} parent=1 // pred_check_branch
      %511 = sbr.rel (0) target = $region29
    $region28: #{tpu_custom_call.1} parent=1 // pred_region
      %s513 = ssub.s32 32, 32
      %514 = vsyncadd [#allocation4], %s513
      %s516 = sshll.u32 [#allocation7], 4
      %s517 = int_to_ptr.vmem [resolvable:$true] %s516
      %519 = dma.vmem_to_hbm [thread:$0]  %s517, 32, %s3, [#allocation4]
    $region29: #{tpu_custom_call.1} parent=1 // pred_fallthru
      _
    // Predicated region
    $region30: #{tpu_custom_call.1} parent=1 // pred_check
      _
    $region31: #{tpu_custom_call.1} parent=1 // pred_check_branch
      %521 = sbr.rel (0) target = $region33
    $region32: #{tpu_custom_call.1} parent=1 // pred_region
      %522 = dma.done [#allocation4], 32
    $region33: #{tpu_custom_call.1} parent=1 // pred_fallthru
      _
    %523 = vsyncpa [#allocation3], 1
    %524 = vsyncpa [#allocation6], 1
    %525 = vsyncpa [#allocation4], 1

</llo_original>
